<compile_context>
chip_gen: v7x
topology: tpu7x:2x2x1
jax: 0.10.0
libtpu: 0.0.40
codegen_flags: <defaults>
</compile_context>

<pallas_src>
import functools

import jax
import jax.numpy as jnp
from jax import lax
from jax.experimental import pallas as pl
from jax.experimental.pallas import tpu as pltpu

BN_EPS = 1e-5
MATMUL_DTYPE = jnp.bfloat16            # bf16 MXU inputs, f32 accumulation
# Scoped-VMEM budget: generous vs the 16/32 MiB defaults on v5e/v6e, but capped
# below v7x's 64 MiB physical so the compiler keeps headroom there.
VMEM_LIMIT_BYTES = 48 * 1024 * 1024


def _round_up(x, m):
    return (x + m - 1) // m * m


def _pick_tn(d_pad, max_tn=512):
    """Largest lane-dense feature-tile width (multiple of 128, <= max_tn) that
    divides d_pad, preferring >= 2 feature tiles so the 'parallel' grid axis
    can actually shard across v7x's two TensorCores."""
    candidates = [c for c in range(128, min(max_tn, d_pad) + 1, 128)
                  if d_pad % c == 0]
    multi = [c for c in candidates if d_pad // c >= 2]
    return max(multi) if multi else max(candidates)


def _vmem_estimate(n, k_pad, k_blk, tn, k_tiled):
    """Rough VMEM footprint (bytes) of the pipeline buffers for this tiling."""
    n8 = _round_up(max(n, 8), 8)
    est = 2 * n8 * k_pad * 2          # x (bf16), fully resident, double-buffered
    est += 2 * k_blk * tn * 2         # W^T tile (bf16), double-buffered
    est += 2 * 8 * tn * 4             # bias/gamma/beta slab (f32)
    est += 2 * n8 * tn * 4            # output block (f32), double-buffered
    if k_tiled:
        est += n8 * tn * 4            # f32 accumulator scratch
    return est


# ---------------------------------------------------------------------------
# Kernels
# ---------------------------------------------------------------------------
def _epilogue(h, p_ref, o_ref):
    """Bias + QuickGELU + BatchNorm1d (training-mode batch stats), in f32.

    p_ref rows: 0 = Linear bias, 1 = BN gamma, 2 = BN beta (rows 3..7 padding).
    Padded feature columns have gamma == 0, so they produce exactly 0 (no NaN);
    they are sliced off in the wrapper anyway.
    """
    h = h + p_ref[0:1, :]                                   # Linear bias
    g = h * jax.nn.sigmoid(1.702 * h)                       # QuickGELU (EUP)
    mean = jnp.mean(g, axis=0, keepdims=True)               # exact: all N rows here
    d = g - mean
    var = jnp.mean(d * d, axis=0, keepdims=True)            # biased var (PyTorch BN)
    scale = p_ref[1:2, :] * lax.rsqrt(var + BN_EPS)         # fused gamma * rsqrt
    o_ref[...] = (d * scale + p_ref[2:3, :]).astype(o_ref.dtype)


def simplenet_kernel_fused(x_ref, wt_ref, p_ref, o_ref):
    """grid = (feature_tiles,). Whole contraction in one block: no accumulator
    scratch, no predicated init/finalize branches."""
    h = jnp.dot(x_ref[...], wt_ref[...], preferred_element_type=jnp.float32)
    _epilogue(h, p_ref, o_ref)


def simplenet_kernel_ktiled(x_ref, wt_ref, p_ref, o_ref, acc_ref, *, tk):
    """grid = (feature_tiles, k_tiles); reduction axis last. x stays fully
    resident (constant index_map); the K slice is taken inside the kernel."""
    k = pl.program_id(1)

    @pl.when(k == 0)
    def _init():
        acc_ref[...] = jnp.zeros_like(acc_ref)

    start = pl.multiple_of(k * tk, 128)
    acc_ref[...] += jnp.dot(x_ref[:, pl.ds(start, tk)], wt_ref[...],
                            preferred_element_type=jnp.float32)

    @pl.when(k == pl.num_programs(1) - 1)
    def _finalize():
        _epilogue(acc_ref[...], p_ref, o_ref)


# ---------------------------------------------------------------------------
# One-time parameter preparation (not on the per-forward critical path)
# ---------------------------------------------------------------------------
def prepare_params(w, b, gamma, beta, d_pad, k_pad, matmul_dtype=MATMUL_DTYPE):
    """w: (D_out, D_in) PyTorch layout. Returns:
       * wt_p:     (k_pad, d_pad) bf16 pre-transposed, zero-padded weight
       * params_p: (8, d_pad) f32 slab -> row 0 bias, row 1 gamma, row 2 beta
    """
    d_out, d_in = w.shape
    wt = jnp.zeros((k_pad, d_pad), matmul_dtype).at[:d_in, :d_out].set(
        w.T.astype(matmul_dtype))
    params = jnp.zeros((8, d_pad), jnp.float32)
    params = params.at[0, :d_out].set(b.astype(jnp.float32))       # Linear bias
    params = params.at[1, :d_out].set(gamma.astype(jnp.float32))   # BN gamma
    params = params.at[2, :d_out].set(beta.astype(jnp.float32))    # BN beta
    return wt, params


# ---------------------------------------------------------------------------
# Forward wrapper (pad + cast + pallas_call + slice under ONE jit)
# ---------------------------------------------------------------------------
@functools.partial(jax.jit,
                   static_argnames=("d_out", "tn", "k_tile", "out_dtype"))
def simplenet_forward(x, wt_p, params_p, *, d_out, tn=None, k_tile=None,
                      out_dtype=jnp.float32):
    n, d_in = x.shape
    k_pad, d_pad = wt_p.shape

    if tn is None:
        tn = _pick_tn(d_pad)
    assert d_pad % tn == 0 and tn % 128 == 0, "tn must be a 128-multiple divisor"
    k_blk = k_pad if k_tile is None else k_tile
    assert k_pad % k_blk == 0 and k_blk % 128 == 0, "bad k_tile"
    k_tiles = k_pad // k_blk
    n_ftiles = d_pad // tn

    # Guard: BatchNorm stats are exact ONLY because all N rows are resident.
    est = _vmem_estimate(n, k_pad, k_blk, tn, k_tiles > 1)
    assert est <= VMEM_LIMIT_BYTES, (
        f"Estimated VMEM footprint {est} B exceeds the {VMEM_LIMIT_BYTES} B "
        f"budget; pass a smaller tn / k_tile, or redesign with a cross-tile "
        f"BatchNorm reduction for large N.")

    # Zero-pad the contraction axis (padded W^T rows are zero too, so padding
    # contributes nothing) and cast to the MXU dtype — fused under this jit.
    x_p = jnp.zeros((n, k_pad), wt_p.dtype).at[:, :d_in].set(x.astype(wt_p.dtype))

    if k_tiles == 1:
        grid = (n_ftiles,)
        kernel = simplenet_kernel_fused
        in_specs = [
            pl.BlockSpec((n, k_pad), lambda j: (0, 0)),     # x, fully resident
            pl.BlockSpec((k_pad, tn), lambda j: (0, j)),    # W^T feature tile
            pl.BlockSpec((8, tn), lambda j: (0, j)),        # bias/gamma/beta slab
        ]
        out_spec = pl.BlockSpec((n, tn), lambda j: (0, j))  # lane-dense output
        scratch = ()
        dims = ("parallel",)
    else:
        grid = (n_ftiles, k_tiles)                          # reduction axis last
        kernel = functools.partial(simplenet_kernel_ktiled, tk=k_blk)
        in_specs = [
            pl.BlockSpec((n, k_pad), lambda j, k: (0, 0)),  # x resident across K
            pl.BlockSpec((k_blk, tn), lambda j, k: (k, j)), # W^T tile
            pl.BlockSpec((8, tn), lambda j, k: (0, j)),     # param slab
        ]
        out_spec = pl.BlockSpec((n, tn), lambda j, k: (0, j))
        scratch = (pltpu.VMEM((n, tn), jnp.float32),)       # f32 accumulator
        dims = ("parallel", "arbitrary")
        # NOTE: if DMA latency shows up on short K loops, the W^T spec can take
        # pipeline_mode=pl.Buffered(3) for deeper buffering.

    out = pl.pallas_call(
        kernel,
        out_shape=jax.ShapeDtypeStruct((n, d_pad), out_dtype),
        grid_spec=pltpu.PrefetchScalarGridSpec(
            num_scalar_prefetch=0,
            grid=grid,
            in_specs=in_specs,
            out_specs=out_spec,
            scratch_shapes=list(scratch),
        ),
        compiler_params=pltpu.CompilerParams(
            dimension_semantics=dims,
            vmem_limit_bytes=VMEM_LIMIT_BYTES,
        ),
    )(x_p, wt_p, params_p)

    # Padded columns (>= d_out) are exactly 0; slice them off inside the jit.
    return out[:, :d_out]


# ---------------------------------------------------------------------------
# Plain-JAX reference (mirrors the PyTorch module; same matmul dtype as kernel)
# ---------------------------------------------------------------------------
def reference_forward(x, w, b, gamma, beta, matmul_dtype=MATMUL_DTYPE):
    h = jnp.dot(x.astype(matmul_dtype), w.T.astype(matmul_dtype),
                preferred_element_type=jnp.float32) + b
    g = h * jax.nn.sigmoid(1.702 * h)
    mean = jnp.mean(g, axis=0, keepdims=True)
    var = jnp.mean((g - mean) ** 2, axis=0, keepdims=True)
    return (g - mean) / jnp.sqrt(var + BN_EPS) * gamma + beta


if __name__ == "__main__":
    key = jax.random.PRNGKey(0)

    def run_case(n, d, k_tile=None, tn=None):
        kx, kw, kb = jax.random.split(jax.random.fold_in(key, d), 3)
        x = jax.random.normal(kx, (n, d), dtype=jnp.float32)
        bound = 1.0 / (d ** 0.5)
        w = jax.random.uniform(kw, (d, d), minval=-bound, maxval=bound,
                               dtype=jnp.float32)
        b = jax.random.uniform(kb, (d,), minval=-bound, maxval=bound,
                               dtype=jnp.float32)
        gamma = jnp.ones((d,), dtype=jnp.float32)   # BatchNorm1d default weight
        beta = jnp.zeros((d,), dtype=jnp.float32)   # BatchNorm1d default bias

        d_pad = _round_up(d, 128)
        k_pad = _round_up(d, 128)
        wt_p, params_p = prepare_params(w, b, gamma, beta, d_pad, k_pad)

        out = simplenet_forward(x, wt_p, params_p, d_out=d, tn=tn, k_tile=k_tile)
        out = jax.block_until_ready(out)
        ref = reference_forward(x, w, b, gamma, beta)

        assert out.shape == (n, d)
        assert jnp.allclose(out, ref, atol=2e-2, rtol=2e-2), (
            f"mismatch vs reference (N={n}, D={d}, k_tile={k_tile})")

    # Module-consistent small case: batch=8, input_dim=32 -> fused single-K path
    # (grid collapses to (1,), no accumulator, no predicated branches).
    run_case(8, 32)
    # Also exercise the K-tiled accumulator path and a >=2-feature-tile grid
    # (what the v7x megacore sharding relies on) at a still-small size.
    run_case(8, 256, k_tile=128)

    print("KERNEL_OK")
</pallas_src>

<mosaic_0001>
module attributes {stable_mosaic.version = 11 : i64} {
  func.func @simplenet_kernel_fused(%arg0: i32, %arg1: memref<8x128xbf16, #tpu.memory_space<vmem>>, %arg2: memref<128x128xbf16, #tpu.memory_space<vmem>>, %arg3: memref<8x128xf32, #tpu.memory_space<vmem>>, %arg4: memref<8x128xf32, #tpu.memory_space<vmem>>) attributes {dimension_semantics = [#tpu.dimension_semantics<parallel>], iteration_bounds = array<i64: 1>, scalar_prefetch = 0 : i64, scratch_operands = 0 : i64, tpu.core_type = #tpu.core_type<tc>, window_params = [{pipeline_mode = #tpu.pipeline_mode<synchronous>, transform_indices = @transform_0, window_bounds = array<i64: 8, 128>}, {transform_indices = @transform_1, window_bounds = array<i64: 128, 128>}, {transform_indices = @transform_2, window_bounds = array<i64: 8, 128>}, {transform_indices = @transform_3, window_bounds = array<i64: 8, 128>}]} {
    %c0 = arith.constant 0 : index
    %c0_0 = arith.constant 0 : index
    %0 = vector.load %arg1[%c0, %c0_0] : memref<8x128xbf16, #tpu.memory_space<vmem>>, vector<8x128xbf16>
    %c0_1 = arith.constant 0 : index
    %c0_2 = arith.constant 0 : index
    %1 = vector.load %arg2[%c0_1, %c0_2] : memref<128x128xbf16, #tpu.memory_space<vmem>>, vector<128x128xbf16>
    %cst = arith.constant dense<0.000000e+00> : vector<8x128xf32>
    %2 = tpu.matmul %0, %1, %cst {dimension_numbers = #tpu.dot_dimension_numbers<[1], [0], [0], [1], [0, 0, 1, 1], [], []>} : vector<8x128xbf16>, vector<128x128xbf16>, vector<8x128xf32> -> vector<8x128xf32>
    %c0_3 = arith.constant 0 : index
    %c0_4 = arith.constant 0 : index
    %3 = vector.load %arg3[%c0_3, %c0_4] : memref<8x128xf32, #tpu.memory_space<vmem>>, vector<1x128xf32>
    %4 = vector.broadcast %3 : vector<1x128xf32> to vector<8x128xf32>
    %5 = arith.addf %2, %4 : vector<8x128xf32>
    %cst_5 = arith.constant 1.702000e+00 : f32
    %6 = vector.broadcast %cst_5 : f32 to vector<8x128xf32>
    %7 = arith.mulf %6, %5 : vector<8x128xf32>
    %8 = arith.negf %7 : vector<8x128xf32>
    %9 = math.exp %8 : vector<8x128xf32>
    %cst_6 = arith.constant 1.000000e+00 : f32
    %10 = vector.broadcast %cst_6 : f32 to vector<8x128xf32>
    %11 = arith.addf %10, %9 : vector<8x128xf32>
    %12 = arith.divf %10, %11 : vector<8x128xf32>
    %13 = arith.mulf %5, %12 : vector<8x128xf32>
    %cst_7 = arith.constant dense<0.000000e+00> : vector<128xf32>
    %14 = vector.multi_reduction <add>, %13, %cst_7 [0] : vector<8x128xf32> to vector<128xf32>
    %15 = vector.shape_cast %14 : vector<128xf32> to vector<1x128xf32>
    %cst_8 = arith.constant 8.000000e+00 : f32
    %16 = vector.broadcast %cst_8 : f32 to vector<1x128xf32>
    %17 = arith.divf %15, %16 : vector<1x128xf32>
    %18 = vector.broadcast %17 : vector<1x128xf32> to vector<8x128xf32>
    %19 = arith.subf %13, %18 : vector<8x128xf32>
    %20 = arith.mulf %19, %19 : vector<8x128xf32>
    %cst_9 = arith.constant dense<0.000000e+00> : vector<128xf32>
    %21 = vector.multi_reduction <add>, %20, %cst_9 [0] : vector<8x128xf32> to vector<128xf32>
    %22 = vector.shape_cast %21 : vector<128xf32> to vector<1x128xf32>
    %cst_10 = arith.constant 8.000000e+00 : f32
    %23 = vector.broadcast %cst_10 : f32 to vector<1x128xf32>
    %24 = arith.divf %22, %23 : vector<1x128xf32>
    %c1 = arith.constant 1 : index
    %c0_11 = arith.constant 0 : index
    %25 = vector.load %arg3[%c1, %c0_11] : memref<8x128xf32, #tpu.memory_space<vmem>>, vector<1x128xf32>
    %cst_12 = arith.constant 9.99999974E-6 : f32
    %26 = vector.broadcast %cst_12 : f32 to vector<1x128xf32>
    %27 = arith.addf %24, %26 : vector<1x128xf32>
    %28 = math.rsqrt %27 : vector<1x128xf32>
    %29 = arith.mulf %25, %28 : vector<1x128xf32>
    %30 = vector.broadcast %29 : vector<1x128xf32> to vector<8x128xf32>
    %31 = arith.mulf %19, %30 : vector<8x128xf32>
    %c2 = arith.constant 2 : index
    %c0_13 = arith.constant 0 : index
    %32 = vector.load %arg3[%c2, %c0_13] : memref<8x128xf32, #tpu.memory_space<vmem>>, vector<1x128xf32>
    %33 = vector.broadcast %32 : vector<1x128xf32> to vector<8x128xf32>
    %34 = arith.addf %31, %33 : vector<8x128xf32>
    %c0_14 = arith.constant 0 : index
    %c0_15 = arith.constant 0 : index
    %35 = vector.load %arg4[%c0_14, %c0_15] : memref<8x128xf32, #tpu.memory_space<vmem>>, vector<8x128xf32>
    tpu.vector_store %arg4[%c0_14, %c0_15], %34 {strides = array<i32>} : memref<8x128xf32, #tpu.memory_space<vmem>>, vector<8x128xf32>,
    return
  }
  func.func @transform_0(%arg0: i32) -> (i32, i32) {
    %c0_i32 = arith.constant 0 : i32
    %c0_i32_0 = arith.constant 0 : i32
    %c0_i32_1 = arith.constant 0 : i32
    return %c0_i32, %c0_i32_0 : i32, i32
  }
  func.func @transform_1(%arg0: i32) -> (i32, i32) {
    %c0_i32 = arith.constant 0 : i32
    %c0_i32_0 = arith.constant 0 : i32
    return %c0_i32, %arg0 : i32, i32
  }
  func.func @transform_2(%arg0: i32) -> (i32, i32) {
    %c0_i32 = arith.constant 0 : i32
    %c0_i32_0 = arith.constant 0 : i32
    return %c0_i32, %arg0 : i32, i32
  }
  func.func @transform_3(%arg0: i32) -> (i32, i32) {
    %c0_i32 = arith.constant 0 : i32
    %c0_i32_0 = arith.constant 0 : i32
    return %c0_i32, %arg0 : i32, i32
  }
}

</mosaic_0001>

<llo_original>
// kernel: simplenet_forward.1
$region0: #{simplenet_forward.1}
  #allocation0 [shape = 'u32[]', space=smem, size = 0x4, offset = 0x4, fixed_abs, tag = 'smem constant byte address 0x4 - core index']
  #allocation1 [shape = 'u32[144,128]{1,0:T(1,128)}', space=vmem, size = 0x12000, scoped, tag = 'internal scratch']
  %s0 = inlined_call_operand.vmem [shape: bf16[8,128], index: 0, kind: input, shape index: {}]
  %s1 = inlined_call_operand.hbm [shape: bf16[128,128], index: 1, kind: input, shape index: {}]
  %s2 = inlined_call_operand.vmem [shape: f32[8,128], index: 2, kind: input, shape index: {}]
  %s3 = inlined_call_operand.hbm [shape: f32[8,128], index: 3, kind: output, shape index: {}]
  %s4 = sld [smem:[#allocation0]]
  $region26: #{simplenet_forward.1} parent=0
    _
  %s6 = ssub.s32 1, %s4
  %s7 = scalar_select 0, %s6, %s4
  $region1: #{simplenet_forward.1} parent=0
    #allocation2 [shape = 'u8[32768]{0}', space=vmem, size = 0x8000, scoped, tag = 'input window, operand 1, single buffered']
    #allocation3 [shape = 's32[1]{0}', space=sflag, size = 0x4, scoped, tag = 'scoped memory for simplenet_forward.1']
    #allocation4 [shape = 's32[1]{0}', space=sflag, size = 0x4, scoped, tag = 'scoped memory for simplenet_forward.1']
    #allocation5 [shape = 'u8[4096]{0}', space=vmem, size = 0x1000, scoped, tag = 'output window, operand 0, single buffered']
    %8 = vsyncpa [#allocation3], 0
    %9 = vsyncpa [#allocation4], 0
    // Predicated region
    $region2: #{simplenet_forward.1} parent=1 // pred_check
      _
    $region3: #{simplenet_forward.1} parent=1 // pred_check_branch
      %11 = sbr.rel (0) target = $region5
    $region4: #{simplenet_forward.1} parent=1 // pred_region
      _
    $region5: #{simplenet_forward.1} parent=1 // pred_fallthru
      _
    // Predicated region
    $region6: #{simplenet_forward.1} parent=1 // pred_check
      _
    $region7: #{simplenet_forward.1} parent=1 // pred_check_branch
      %13 = sbr.rel (0) target = $region9
    $region8: #{simplenet_forward.1} parent=1 // pred_region
      %s15 = ssub.s32 1024, 1024
      %16 = vsyncadd [#allocation3], %s15
      %s17 = sshll.u32 [#allocation2], 4
      %s18 = int_to_ptr.vmem [resolvable:$true] %s17
      %23 = dma.hbm_to_vmem [thread:$0]  %s1, 1024, %s18, [#allocation3], 64, 64, 4
    $region9: #{simplenet_forward.1} parent=1 // pred_fallthru
      _
    // Predicated region
    $region10: #{simplenet_forward.1} parent=1 // pred_check
      _
    $region11: #{simplenet_forward.1} parent=1 // pred_check_branch
      %25 = sbr.rel (0) target = $region13
    $region12: #{simplenet_forward.1} parent=1 // pred_region
      _
    $region13: #{simplenet_forward.1} parent=1 // pred_fallthru
      _
    // Predicated region
    $region14: #{simplenet_forward.1} parent=1 // pred_check
      _
    $region15: #{simplenet_forward.1} parent=1 // pred_check_branch
      %27 = sbr.rel (0) target = $region17
    $region16: #{simplenet_forward.1} parent=1 // pred_region
      %28 = dma.done [#allocation3], 1024
    $region17: #{simplenet_forward.1} parent=1 // pred_fallthru
      _
    %v30 = vld [vmem:[%s0] sm:$0xf]
    %v31 = vld [vmem:[#allocation2] sm:$0xf]
    %v32 = vld [vmem:[#allocation2 + $0x4] sm:$0xf]
    %v33 = vld [vmem:[#allocation2 + $0x8] sm:$0xf]
    %v34 = vld [vmem:[#allocation2 + $0xc] sm:$0xf]
    %v35 = vld [vmem:[#allocation2 + $0x10] sm:$0xf]
    %v36 = vld [vmem:[#allocation2 + $0x14] sm:$0xf]
    %v37 = vld [vmem:[#allocation2 + $0x18] sm:$0xf]
    %v38 = vld [vmem:[#allocation2 + $0x1c] sm:$0xf]
    %v39 = vld [vmem:[#allocation2 + $0x20] sm:$0xf]
    %v40 = vld [vmem:[#allocation2 + $0x24] sm:$0xf]
    %v41 = vld [vmem:[#allocation2 + $0x28] sm:$0xf]
    %v42 = vld [vmem:[#allocation2 + $0x2c] sm:$0xf]
    %v43 = vld [vmem:[#allocation2 + $0x30] sm:$0xf]
    %v44 = vld [vmem:[#allocation2 + $0x34] sm:$0xf]
    %v45 = vld [vmem:[#allocation2 + $0x38] sm:$0xf]
    %v46 = vld [vmem:[#allocation2 + $0x3c] sm:$0xf]
    %v47 = vld [vmem:[%s2] sm:$0x1]
    %v48 = vlaneseq
    %v49 = vshrl.u32 %v48, 7
    %v50 = vsub.s32 0, %v49
    %v51 = vrot.slane %v47, %v50
    %v68 = vunpack.c.l.b16 %v31
    %v69 = vunpack.c.l.b16 %v32
    %v70 = vunpack.c.l.b16 %v33
    %v71 = vunpack.c.l.b16 %v34
    %v72 = vunpack.c.l.b16 %v35
    %v73 = vunpack.c.l.b16 %v36
    %v74 = vunpack.c.l.b16 %v37
    %v75 = vunpack.c.l.b16 %v38
    %v76 = vunpack.c.l.b16 %v39
    %v77 = vunpack.c.l.b16 %v40
    %v78 = vunpack.c.l.b16 %v41
    %v79 = vunpack.c.l.b16 %v42
    %v80 = vunpack.c.l.b16 %v43
    %v81 = vunpack.c.l.b16 %v44
    %v82 = vunpack.c.l.b16 %v45
    %v83 = vunpack.c.l.b16 %v46
    %v84 = vpack.c.b16 %v69, %v68
    %v85 = vpack.c.b16 %v71, %v70
    %v86 = vpack.c.b16 %v73, %v72
    %v87 = vpack.c.b16 %v75, %v74
    %v88 = vpack.c.b16 %v77, %v76
    %v89 = vpack.c.b16 %v79, %v78
    %v90 = vpack.c.b16 %v81, %v80
    %v91 = vpack.c.b16 %v83, %v82
    %100 = vmatprep.subr.bf16.mxu0 0
    %101 = vmatpush1.bf16.msra.mxu0 %v84
    %102 = vmatprep.subr.bf16.mxu0 0
    %103 = vmatpush1.bf16.msra.mxu0 %v85
    %104 = vmatprep.subr.bf16.mxu0 0
    %105 = vmatpush1.bf16.msra.mxu0 %v86
    %106 = vmatprep.subr.bf16.mxu0 0
    %107 = vmatpush1.bf16.msra.mxu0 %v87
    %108 = vmatprep.subr.bf16.mxu0 0
    %109 = vmatpush1.bf16.msra.mxu0 %v88
    %110 = vmatprep.subr.bf16.mxu0 0
    %111 = vmatpush1.bf16.msra.mxu0 %v89
    %112 = vmatprep.subr.bf16.mxu0 0
    %113 = vmatpush1.bf16.msra.mxu0 %v90
    %114 = vmatprep.subr.bf16.mxu0 0
    %115 = vmatpush1.bf16.msra.mxu0 %v91
    %116 = vmatprep.subr.bf16.mxu0 0
    %117 = vmatpush1.bf16.msra.mxu0 0
    %118 = vmatprep.subr.bf16.mxu0 0
    %119 = vmatpush1.bf16.msra.mxu0 0
    %120 = vmatprep.subr.bf16.mxu0 0
    %121 = vmatpush1.bf16.msra.mxu0 0
    %122 = vmatprep.subr.bf16.mxu0 0
    %123 = vmatpush1.bf16.msra.mxu0 0
    %124 = vmatprep.subr.bf16.mxu0 0
    %125 = vmatpush1.bf16.msra.mxu0 0
    %126 = vmatprep.subr.bf16.mxu0 0
    %127 = vmatpush1.bf16.msra.mxu0 0
    %128 = vmatprep.subr.bf16.mxu0 0
    %129 = vmatpush1.bf16.msra.mxu0 0
    %130 = vmatprep.subr.bf16.mxu0 0
    %131 = vmatpush1.bf16.msra.mxu0 0
    %132 = vmatprep.mubr.bf16.mxu0 0
    %133 = vmatmul.mubr.bf16.gmra.mrb[0].mxu0 %v30
    %v134 = vpop.f32.mrb[0].mxu0
    %v135 = vadd.f32 %v51, %v134
    %v136 = vpop.f32.mrb[0].mxu0
    %v137 = vpop.f32.mrb[0].mxu0
    %v138 = vpop.f32.mrb[0].mxu0
    %139 = vdwg.mxu0
    %v140 = vmul.f32 %v135, 1.702
    %v141 = vxor.u32 %v140, 2147483648
    %v142 = vmul.f32 %v141, 1.442695
    %v143 = vpow.pop %v142
    %v144 = vadd.f32 %v143, 1.0
    %v145 = vrcp.pop %v144
    %v146 = vmul.f32 1.0, %v145
    %v147 = vmul.f32 %v135, %v146
    %v148 = vrot.slane %v147, 4
    %v149 = vadd.f32 %v147, %v148
    %v150 = vrot.slane %v149, 2
    %v151 = vadd.f32 %v149, %v150
    %v152 = vrot.slane %v151, 1
    %v153 = vadd.f32 %v151, %v152
    %v154 = vrcp.pop 8.0
    %v155 = vmul.f32 %v153, %v154
    %v156 = vsub.f32 %v147, %v155
    %v157 = vmul.f32 %v156, %v156
    %v158 = vrot.slane %v157, 4
    %v159 = vadd.f32 %v157, %v158
    %v160 = vrot.slane %v159, 2
    %v161 = vadd.f32 %v159, %v160
    %v162 = vrot.slane %v161, 1
    %v163 = vadd.f32 %v161, %v162
    %v164 = vmul.f32 %v163, %v154
    %v165 = vld [vmem:[%s2 + $0x1] sm:$0x1]
    %v166 = vadd.f32 %v164, 1e-05
    %v167 = vrsqrt.pop %v166
    %v168 = vmul.f32 %v165, %v167
    %v169 = vlaneseq
    %v170 = vshrl.u32 %v169, 7
    %v171 = vsub.s32 0, %v170
    %v172 = vrot.slane %v168, %v171
    %v173 = vmul.f32 %v156, %v172
    %v174 = vld [vmem:[%s2 + $0x2] sm:$0x1]
    %v175 = vlaneseq
    %v176 = vshrl.u32 %v175, 7
    %v177 = vsub.s32 0, %v176
    %v178 = vrot.slane %v174, %v177
    %v179 = vadd.f32 %v173, %v178
    %180 = vst [vmem:[#allocation5] sm:$0xff] %v179
    // Predicated region
    $region18: #{simplenet_forward.1} parent=1 // pred_check
      _
    $region19: #{simplenet_forward.1} parent=1 // pred_check_branch
      %182 = sbr.rel (0) target = $region21
    $region20: #{simplenet_forward.1} parent=1 // pred_region
      %s184 = ssub.s32 128, 128
      %185 = vsyncadd [#allocation4], %s184
      %s187 = sshll.u32 [#allocation5], 4
      %s188 = int_to_ptr.vmem [resolvable:$true] %s187
      %190 = dma.vmem_to_hbm [thread:$0]  %s188, 128, %s3, [#allocation4]
    $region21: #{simplenet_forward.1} parent=1 // pred_fallthru
      _
    // Predicated region
    $region22: #{simplenet_forward.1} parent=1 // pred_check
      _
    $region23: #{simplenet_forward.1} parent=1 // pred_check_branch
      %192 = sbr.rel (0) target = $region25
    $region24: #{simplenet_forward.1} parent=1 // pred_region
      %193 = dma.done [#allocation4], 128
    $region25: #{simplenet_forward.1} parent=1 // pred_fallthru
      _
    %194 = vsyncpa [#allocation3], 1
    %195 = vsyncpa [#allocation4], 1

</llo_original>
